<compile_context>
chip_gen: v7x
topology: tpu7x:2x2x1
jax: 0.10.0
libtpu: 0.0.40
codegen_flags: <defaults>
</compile_context>

<pallas_src>
import math

import jax
import jax.numpy as jnp
from jax.experimental import pallas as pl
from jax.experimental.pallas import tpu as pltpu

_LANES = 128            # TPU vreg lane width
_SUBLANES = 8           # f32 sublane granularity
_MAX_TILE_ROWS = 2048   # 2048 * 128 * 4 B = 1 MiB per tile buffer


def _round_up(x, m):
    return ((x + m - 1) // m) * m


def _copy_kernel(pe_ref, out_ref):
    # Identity copy of one lane-dense (tile_r, 128) tile.
    out_ref[...] = pe_ref[...]


def cosine_positional_embedding_slice(flat2d, seq_len, d_model):
    """Return pe[:, :seq_len, :] as (1, seq_len, d_model).

    flat2d  : (pad_rows, 128) lane-dense, row-major-flattened view of the
              (max_len, d_model) table (zero-padded at the tail).
    seq_len : static Python int (taken from x.shape[1] by the caller).
    """
    total = seq_len * d_model
    # Rows of 128 lanes needed, rounded up to the f32 sublane multiple (8).
    n_rows = _round_up(pl.cdiv(total, _LANES), _SUBLANES)
    tile_r = min(n_rows, _MAX_TILE_ROWS)
    grid = (pl.cdiv(n_rows, tile_r),)
    # Table padding in __init__ guarantees every input block read is in bounds.
    assert flat2d.shape[0] >= _round_up(n_rows, tile_r)

    out = pl.pallas_call(
        _copy_kernel,
        out_shape=jax.ShapeDtypeStruct((n_rows, _LANES), flat2d.dtype),
        grid_spec=pltpu.PrefetchScalarGridSpec(
            num_scalar_prefetch=0,
            grid=grid,
            in_specs=[pl.BlockSpec((tile_r, _LANES), lambda i: (i, 0))],
            out_specs=pl.BlockSpec((tile_r, _LANES), lambda i: (i, 0)),
        ),
        compiler_params=pltpu.CompilerParams(
            # No cross-iteration carry -> parallel; lets v7x use both TCs.
            dimension_semantics=("parallel",),
        ),
    )(flat2d)

    # Drop lane-dense padding and restore the (1, seq_len, d_model) layout.
    return out.reshape(-1)[:total].reshape(1, seq_len, d_model)


class CosinePositionalEmbeddingPallas:
    """JAX/Pallas port of the PyTorch CosinePositionalEmbedding."""

    def __init__(self, d_model, max_len=512):
        assert d_model % 2 == 0, "d_model must be even (as in the PyTorch module)"
        # Build the sinusoidal table exactly like the PyTorch module (the
        # random init is fully overwritten, so no RNG is needed here).
        position = jnp.arange(max_len, dtype=jnp.float32)[:, None]            # (L, 1)
        div_term = jnp.exp(jnp.arange(0, d_model, 2, dtype=jnp.float32)
                           * (-(math.log(10000.0) / d_model)))                 # (D/2,)
        angles = position * div_term                                            # (L, D/2)
        pe = jnp.stack([jnp.sin(angles), jnp.cos(angles)], axis=-1)             # (L, D/2, 2)
        pe = pe.reshape(max_len, d_model)       # interleaved: [:,0::2]=sin, [:,1::2]=cos
        self.weight = pe[None, :, :]            # (1, max_len, d_model) reference buffer
        self.d_model = d_model
        self.max_len = max_len

        # Precompute a lane-dense, padded 2D view of the table for the kernel:
        # row-major flatten -> (pad_rows, 128).  Padding guarantees every
        # (tile_r, 128) input block the kernel reads stays in bounds.
        max_rows = pl.cdiv(max_len * d_model, _LANES)
        if max_rows > _MAX_TILE_ROWS:
            pad_rows = _round_up(max_rows, _MAX_TILE_ROWS)
        else:
            pad_rows = _round_up(max_rows, _SUBLANES)
        flat = pe.reshape(-1)
        flat = jnp.pad(flat, (0, pad_rows * _LANES - flat.size))
        self._flat2d = flat.reshape(pad_rows, _LANES)

    def __call__(self, x):
        seq_len = x.shape[1]   # Dim.seq (static Python int)
        assert 1 <= seq_len <= self.max_len
        return cosine_positional_embedding_slice(self._flat2d, seq_len, self.d_model)


if __name__ == "__main__":
    key = jax.random.PRNGKey(0)

    # Small shapes consistent with the module: batch=2, seq=8, d_model=32.
    d_model = 32
    max_len = 64
    batch, seq = 2, 8

    module = CosinePositionalEmbeddingPallas(d_model, max_len)
    x = jax.random.normal(key, (batch, seq, d_model), dtype=jnp.float32)

    out = jax.block_until_ready(module(x))

    # Reference: plain slice of the sinusoidal table (kernel is a pure copy).
    ref = module.weight[:, :seq, :]
    assert out.shape == (1, seq, d_model), out.shape
    assert out.dtype == jnp.float32
    assert jnp.allclose(out, ref), "Pallas output mismatch vs reference slice"

    print("KERNEL_OK")
</pallas_src>

<mosaic_0001>
module attributes {stable_mosaic.version = 11 : i64} {
  func.func @_copy_kernel(%arg0: i32, %arg1: memref<8x128xf32, #tpu.memory_space<vmem>>, %arg2: memref<8x128xf32, #tpu.memory_space<vmem>>) attributes {dimension_semantics = [#tpu.dimension_semantics<parallel>], iteration_bounds = array<i64: 1>, scalar_prefetch = 0 : i64, scratch_operands = 0 : i64, tpu.core_type = #tpu.core_type<tc>, window_params = [{transform_indices = @transform_0, window_bounds = array<i64: 8, 128>}, {transform_indices = @transform_1, window_bounds = array<i64: 8, 128>}]} {
    %c0 = arith.constant 0 : index
    %c0_0 = arith.constant 0 : index
    %0 = vector.load %arg1[%c0, %c0_0] : memref<8x128xf32, #tpu.memory_space<vmem>>, vector<8x128xf32>
    %c0_1 = arith.constant 0 : index
    %c0_2 = arith.constant 0 : index
    %1 = vector.load %arg2[%c0_1, %c0_2] : memref<8x128xf32, #tpu.memory_space<vmem>>, vector<8x128xf32>
    tpu.vector_store %arg2[%c0_1, %c0_2], %0 {strides = array<i32>} : memref<8x128xf32, #tpu.memory_space<vmem>>, vector<8x128xf32>,
    return
  }
  func.func @transform_0(%arg0: i32) -> (i32, i32) {
    %c0_i32 = arith.constant 0 : i32
    %c0_i32_0 = arith.constant 0 : i32
    return %arg0, %c0_i32 : i32, i32
  }
  func.func @transform_1(%arg0: i32) -> (i32, i32) {
    %c0_i32 = arith.constant 0 : i32
    %c0_i32_0 = arith.constant 0 : i32
    return %arg0, %c0_i32 : i32, i32
  }
}

</mosaic_0001>

<llo_original>
// kernel: tpu_custom_call.1
$region0: #{tpu_custom_call.1}
  #allocation0 [shape = 'u32[]', space=smem, size = 0x4, offset = 0x4, fixed_abs, tag = 'smem constant byte address 0x4 - core index']
  #allocation1 [shape = 'u32[144,128]{1,0:T(1,128)}', space=vmem, size = 0x12000, scoped, tag = 'internal scratch']
  %s0 = inlined_call_operand.hbm [shape: f32[16,128], index: 0, kind: input, shape index: {}]
  %s1 = inlined_call_operand.hbm [shape: f32[8,128], index: 1, kind: output, shape index: {}]
  %s2 = sld [smem:[#allocation0]]
  $region18: #{tpu_custom_call.1} parent=0
    _
  %s4 = ssub.s32 1, %s2
  %s5 = scalar_select 0, %s4, %s2
  $region1: #{tpu_custom_call.1} parent=0
    #allocation2 [shape = 'u8[4096]{0}', space=vmem, size = 0x1000, scoped, tag = 'input window, operand 0, single buffered']
    #allocation3 [shape = 's32[1]{0}', space=sflag, size = 0x4, scoped, tag = 'scoped memory for tpu_custom_call.1']
    #allocation4 [shape = 's32[1]{0}', space=sflag, size = 0x4, scoped, tag = 'scoped memory for tpu_custom_call.1']
    #allocation5 [shape = 'u8[4096]{0}', space=vmem, size = 0x1000, scoped, tag = 'output window, operand 0, single buffered']
    %6 = vsyncpa [#allocation3], 0
    %7 = vsyncpa [#allocation4], 0
    // Predicated region
    $region2: #{tpu_custom_call.1} parent=1 // pred_check
      _
    $region3: #{tpu_custom_call.1} parent=1 // pred_check_branch
      %9 = sbr.rel (0) target = $region5
    $region4: #{tpu_custom_call.1} parent=1 // pred_region
      %s11 = ssub.s32 128, 128
      %12 = vsyncadd [#allocation3], %s11
      %s14 = sshll.u32 [#allocation2], 4
      %s15 = int_to_ptr.vmem [resolvable:$true] %s14
      %17 = dma.hbm_to_vmem [thread:$0]  %s0, 128, %s15, [#allocation3]
    $region5: #{tpu_custom_call.1} parent=1 // pred_fallthru
      _
    // Predicated region
    $region6: #{tpu_custom_call.1} parent=1 // pred_check
      _
    $region7: #{tpu_custom_call.1} parent=1 // pred_check_branch
      %19 = sbr.rel (0) target = $region9
    $region8: #{tpu_custom_call.1} parent=1 // pred_region
      %20 = dma.done [#allocation3], 128
    $region9: #{tpu_custom_call.1} parent=1 // pred_fallthru
      _
    %v21 = vld [vmem:[#allocation2] sm:$0xff]
    %22 = vst [vmem:[#allocation5] sm:$0xff] %v21
    // Predicated region
    $region10: #{tpu_custom_call.1} parent=1 // pred_check
      _
    $region11: #{tpu_custom_call.1} parent=1 // pred_check_branch
      %24 = sbr.rel (0) target = $region13
    $region12: #{tpu_custom_call.1} parent=1 // pred_region
      %s26 = ssub.s32 128, 128
      %27 = vsyncadd [#allocation4], %s26
      %s29 = sshll.u32 [#allocation5], 4
      %s30 = int_to_ptr.vmem [resolvable:$true] %s29
      %32 = dma.vmem_to_hbm [thread:$0]  %s30, 128, %s1, [#allocation4]
    $region13: #{tpu_custom_call.1} parent=1 // pred_fallthru
      _
    // Predicated region
    $region14: #{tpu_custom_call.1} parent=1 // pred_check
      _
    $region15: #{tpu_custom_call.1} parent=1 // pred_check_branch
      %34 = sbr.rel (0) target = $region17
    $region16: #{tpu_custom_call.1} parent=1 // pred_region
      %35 = dma.done [#allocation4], 128
    $region17: #{tpu_custom_call.1} parent=1 // pred_fallthru
      _
    %36 = vsyncpa [#allocation3], 1
    %37 = vsyncpa [#allocation4], 1

</llo_original>
